<compile_context>
chip_gen: v5e
topology: v5e:2x2
jax: 0.10.0
libtpu: 0.0.40
codegen_flags: <defaults>
</compile_context>

<pallas_src>
import jax
import jax.numpy as jnp
from jax.experimental import pallas as pl
from jax.experimental.pallas import tpu as pltpu


def _pos_embed_kernel(wpos_ref, out_ref):
    # wpos_ref : (1, f_tile)       flattened tile of W_pos[:seq_len]
    # out_ref  : (b_tile, f_tile)  lane-dense output slab covering b_tile batch rows
    out_ref[...] = jnp.broadcast_to(wpos_ref[...], out_ref.shape)


def _pick_tiles(batch: int, flat: int, itemsize: int, budget_bytes: int):
    """Choose (b_tile, f_tile) so double-buffered (1, f_tile) input and
    (b_tile, f_tile) output tiles fit within `budget_bytes` of VMEM."""
    # 2 * f_tile * itemsize * (1 + b_tile) <= budget
    max_f_full_batch = budget_bytes // (2 * itemsize * (batch + 1))
    if flat <= max_f_full_batch:
        # A single slab covers a full batch stripe of the F axis.
        return batch, flat
    if max_f_full_batch >= 128:
        # Keep the whole batch per slab, tile F in lane-dense multiples of 128.
        return batch, (max_f_full_batch // 128) * 128
    # Batch itself is too large to carry whole: tile batch in multiples of 8.
    f_tile = 128 if flat >= 128 else flat
    max_b = budget_bytes // (2 * itemsize * f_tile) - 1
    b_tile = max(8, (max_b // 8) * 8)
    if batch > 8:
        b_tile = min(b_tile, (batch // 8) * 8)
    else:
        b_tile = batch
    return b_tile, f_tile


def pos_embedding(
    tokens: jax.Array,
    w_pos: jax.Array,
    *,
    tile_budget_bytes: int = 32 * 1024 * 1024,
    vmem_limit_bytes: int = 48 * 1024 * 1024,
) -> jax.Array:
    """Replicates PosEmbedding.forward: repeat W_pos[:seq_len] over the batch axis."""
    batch, seq_len = tokens.shape
    n_ctx, d_model = w_pos.shape
    assert seq_len <= n_ctx

    flat = seq_len * d_model
    itemsize = w_pos.dtype.itemsize
    b_tile, f_tile = _pick_tiles(batch, flat, itemsize, tile_budget_bytes)

    # Lane-dense flattened view (contiguous reshape — effectively free in XLA).
    # TODO(synk): emit bf16 here if the consumer accepts it — halves the HBM write
    # bytes, which are the entire cost of this op.
    w_flat = w_pos[:seq_len].reshape(1, flat)

    # Batch is the innermost (fastest-varying) grid axis -> W_pos block index is
    # constant across consecutive steps, so its DMA is issued once per F tile.
    grid = (pl.cdiv(flat, f_tile), pl.cdiv(batch, b_tile))

    out_flat = pl.pallas_call(
        _pos_embed_kernel,
        out_shape=jax.ShapeDtypeStruct((batch, flat), w_pos.dtype),
        grid_spec=pltpu.PrefetchScalarGridSpec(
            num_scalar_prefetch=0,
            grid=grid,
            in_specs=[
                pl.BlockSpec((1, f_tile), lambda fi, bi: (0, fi)),
            ],
            out_specs=pl.BlockSpec((b_tile, f_tile), lambda fi, bi: (bi, fi)),
        ),
        compiler_params=pltpu.CompilerParams(
            dimension_semantics=("parallel", "parallel"),
            vmem_limit_bytes=vmem_limit_bytes,
        ),
    )(w_flat)

    return out_flat.reshape(batch, seq_len, d_model)


if __name__ == "__main__":
    # Config mirroring the PyTorch module (synthetic, deterministic init).
    n_ctx, d_model, init_range = 16, 32, 0.02
    batch, seq_len = 2, 8

    key = jax.random.PRNGKey(0)
    k_wpos, k_tok = jax.random.split(key)

    w_pos = init_range * jax.random.normal(k_wpos, (n_ctx, d_model), dtype=jnp.float32)
    tokens = jax.random.randint(k_tok, (batch, seq_len), 0, n_ctx, dtype=jnp.int32)

    out = jax.block_until_ready(pos_embedding(tokens, w_pos))
    ref = jnp.broadcast_to(w_pos[:seq_len][None], (batch, seq_len, d_model))
    assert out.shape == (batch, seq_len, d_model)
    assert out.dtype == jnp.float32
    assert jnp.array_equal(out, ref)

    # Exercise the F-tiled path (forced-small tile budget) at still-small shapes.
    b2, s2, d2 = 2, 16, 128
    w2 = init_range * jax.random.normal(k_wpos, (32, d2), dtype=jnp.float32)
    t2 = jnp.zeros((b2, s2), dtype=jnp.int32)
    out2 = jax.block_until_ready(pos_embedding(t2, w2, tile_budget_bytes=12 * 1024))
    ref2 = jnp.broadcast_to(w2[:s2][None], (b2, s2, d2))
    assert jnp.array_equal(out2, ref2)

    # Exercise the batch-tiled path (forced-small tile budget).
    b3, s3, d3 = 16, 8, 128
    w3 = init_range * jax.random.normal(k_wpos, (16, d3), dtype=jnp.float32)
    t3 = jnp.zeros((b3, s3), dtype=jnp.int32)
    out3 = jax.block_until_ready(pos_embedding(t3, w3, tile_budget_bytes=8 * 1024))
    ref3 = jnp.broadcast_to(w3[:s3][None], (b3, s3, d3))
    assert jnp.array_equal(out3, ref3)

    print("KERNEL_OK")
</pallas_src>

<mosaic_0001>
module attributes {stable_mosaic.version = 11 : i64} {
  func.func @_pos_embed_kernel(%arg0: i32, %arg1: i32, %arg2: memref<1x256xf32, #tpu.memory_space<vmem>>, %arg3: memref<2x256xf32, #tpu.memory_space<vmem>>) attributes {dimension_semantics = [#tpu.dimension_semantics<parallel>, #tpu.dimension_semantics<parallel>], iteration_bounds = array<i64: 1, 1>, scalar_prefetch = 0 : i64, scratch_operands = 0 : i64, tpu.core_type = #tpu.core_type<tc>, window_params = [{transform_indices = @transform_0, window_bounds = array<i64: 1, 256>}, {transform_indices = @transform_1, window_bounds = array<i64: 2, 256>}]} {
    %c0 = arith.constant 0 : index
    %c0_0 = arith.constant 0 : index
    %0 = vector.load %arg2[%c0, %c0_0] : memref<1x256xf32, #tpu.memory_space<vmem>>, vector<1x256xf32>
    %1 = vector.shape_cast %0 : vector<1x256xf32> to vector<1x256xf32>
    %2 = vector.broadcast %1 : vector<1x256xf32> to vector<2x256xf32>
    %c0_1 = arith.constant 0 : index
    %c0_2 = arith.constant 0 : index
    %3 = vector.load %arg3[%c0_1, %c0_2] : memref<2x256xf32, #tpu.memory_space<vmem>>, vector<2x256xf32>
    tpu.vector_store %arg3[%c0_1, %c0_2], %2 {strides = array<i32>} : memref<2x256xf32, #tpu.memory_space<vmem>>, vector<2x256xf32>,
    return
  }
  func.func @transform_0(%arg0: i32, %arg1: i32) -> (i32, i32) {
    %c0_i32 = arith.constant 0 : i32
    %c0_i32_0 = arith.constant 0 : i32
    return %c0_i32, %arg0 : i32, i32
  }
  func.func @transform_1(%arg0: i32, %arg1: i32) -> (i32, i32) {
    %c0_i32 = arith.constant 0 : i32
    return %arg1, %arg0 : i32, i32
  }
}

</mosaic_0001>

<llo_original>
// kernel: tpu_custom_call.1
$region0: #{tpu_custom_call.1}
  #allocation0 [shape = 'u32[]', space=smem, size = 0x4, offset = 0x4, fixed_abs, tag = 'smem constant byte address 0x4 - core index']
  #allocation1 [shape = 'u32[72,128]{1,0:T(1,128)}', space=vmem, size = 0x9000, scoped, tag = 'internal scratch']
  %s0 = inlined_call_operand.hbm [shape: f32[1,256], index: 0, kind: input, shape index: {}]
  %s1 = inlined_call_operand.hbm [shape: f32[2,256], index: 1, kind: output, shape index: {}]
  %s2 = sld [smem:[#allocation0]]
  $region18: #{tpu_custom_call.1} parent=0
    _
  %s4 = ssub.s32 1, %s2
  %s5 = scalar_select 0, %s4, %s2
  $region1: #{tpu_custom_call.1} parent=0
    #allocation2 [shape = 'u8[1024]{0}', space=vmem, size = 0x400, scoped, tag = 'input window, operand 0, single buffered']
    #allocation3 [shape = 's32[1]{0}', space=sflag, size = 0x4, scoped, tag = 'scoped memory for tpu_custom_call.1']
    #allocation4 [shape = 's32[1]{0}', space=sflag, size = 0x4, scoped, tag = 'scoped memory for tpu_custom_call.1']
    #allocation5 [shape = 'u8[2048]{0}', space=vmem, size = 0x800, scoped, tag = 'output window, operand 0, single buffered']
    %6 = vsyncpa [#allocation3], 0
    %7 = vsyncpa [#allocation4], 0
    // Predicated region
    $region2: #{tpu_custom_call.1} parent=1 // pred_check
      _
    $region3: #{tpu_custom_call.1} parent=1 // pred_check_branch
      %9 = sbr.rel (0) target = $region5
    $region4: #{tpu_custom_call.1} parent=1 // pred_region
      %11 = vsyncadd [#allocation3], 0
      %s13 = sshll.u32 %s0, 4
      %s14 = int_to_ptr.hbm [resolvable:$true] %s13
      %s15 = sshll.u32 [#allocation2], 4
      %s16 = int_to_ptr.vmem [resolvable:$true] %s15
      %18 = dma.hbm_to_vmem [thread:$0]  %s14, 32, %s16, [#allocation3]
    $region5: #{tpu_custom_call.1} parent=1 // pred_fallthru
      _
    // Predicated region
    $region6: #{tpu_custom_call.1} parent=1 // pred_check
      _
    $region7: #{tpu_custom_call.1} parent=1 // pred_check_branch
      %20 = sbr.rel (0) target = $region9
    $region8: #{tpu_custom_call.1} parent=1 // pred_region
      %22 = dma.done [#allocation3], 32
    $region9: #{tpu_custom_call.1} parent=1 // pred_fallthru
      _
    %v23 = vld [vmem:[#allocation2] sm:$0x3]
    %v25 = vperm.slane %v23, 0
    %v26 = vperm.slane %v23, 1
    %v27 = vrot.slane %v26, 6
    %vm28 = vcmask 1041408
    %v29 = vsel %vm28, %v25, %v27
    %31 = vst [vmem:[#allocation5] sm:$0xf] %v29
    // Predicated region
    $region10: #{tpu_custom_call.1} parent=1 // pred_check
      _
    $region11: #{tpu_custom_call.1} parent=1 // pred_check_branch
      %33 = sbr.rel (0) target = $region13
    $region12: #{tpu_custom_call.1} parent=1 // pred_region
      %35 = vsyncadd [#allocation4], 0
      %s37 = sshll.u32 [#allocation5], 4
      %s38 = int_to_ptr.vmem [resolvable:$true] %s37
      %s39 = sshll.u32 %s1, 4
      %s40 = int_to_ptr.hbm [resolvable:$true] %s39
      %42 = dma.vmem_to_hbm [thread:$0]  %s38, 64, %s40, [#allocation4]
    $region13: #{tpu_custom_call.1} parent=1 // pred_fallthru
      _
    // Predicated region
    $region14: #{tpu_custom_call.1} parent=1 // pred_check
      _
    $region15: #{tpu_custom_call.1} parent=1 // pred_check_branch
      %44 = sbr.rel (0) target = $region17
    $region16: #{tpu_custom_call.1} parent=1 // pred_region
      %46 = dma.done [#allocation4], 64
    $region17: #{tpu_custom_call.1} parent=1 // pred_fallthru
      _
    %47 = vsyncpa [#allocation3], 1
    %48 = vsyncpa [#allocation4], 1

</llo_original>
